<compile_context>
chip_gen: v6e
topology: v6e:2x2x1
jax: 0.10.0
libtpu: 0.0.40
codegen_flags: <defaults>
</compile_context>

<pallas_src>
import functools

import jax
import jax.numpy as jnp
from jax.experimental import pallas as pl
from jax.experimental.pallas import tpu as pltpu


# ----------------------------------------------------------------------------
# Mish with a numerically stable softplus: sp(x) = max(x,0) + log1p(exp(-|x|))
# ----------------------------------------------------------------------------
def _mish(x):
    sp = jnp.maximum(x, 0.0) + jnp.log1p(jnp.exp(-jnp.abs(x)))
    return x * jnp.tanh(sp)


# ----------------------------------------------------------------------------
# Pallas kernel: out = [mish](x @ w + b)   (f32 accumulate, f32 epilogue)
# ----------------------------------------------------------------------------
def _matmul_bias_kernel(x_ref, w_ref, b_ref, o_ref, *, apply_mish):
    acc = jnp.dot(x_ref[...], w_ref[...], preferred_element_type=jnp.float32)
    acc = acc + b_ref[...]                    # (M, N) + (1, N)
    if apply_mish:
        acc = _mish(acc)
    o_ref[...] = acc.astype(o_ref.dtype)


def pallas_linear(x, w, b, *, apply_mish, compute_dtype=jnp.bfloat16):
    """x: (M, K), w: (K, N), b: (N,) -> (M, N) f32, computed in a Pallas kernel."""
    M, K = x.shape
    Kw, N = w.shape
    assert K == Kw
    xc = x.astype(compute_dtype)
    wc = w.astype(compute_dtype)
    b2 = b.reshape(1, N).astype(jnp.float32)
    kernel = functools.partial(_matmul_bias_kernel, apply_mish=apply_mish)

    # Pick an M tile: only grid when M is large and divides cleanly; otherwise the
    # whole problem fits in a single VMEM block.
    tm = M
    for cand in (1024, 512, 256):
        if M > cand and M % cand == 0:
            tm = cand
            break

    if tm == M:
        return pl.pallas_call(
            kernel,
            out_shape=jax.ShapeDtypeStruct((M, N), jnp.float32),
            in_specs=[
                pl.BlockSpec((M, K), lambda: (0, 0)),
                pl.BlockSpec((K, N), lambda: (0, 0)),
                pl.BlockSpec((1, N), lambda: (0, 0)),
            ],
            out_specs=pl.BlockSpec((M, N), lambda: (0, 0)),
        )(xc, wc, b2)

    # M-tiled path for large inputs: rows are independent -> "parallel" so v7x can
    # shard the grid across both TensorCores; explicit VMEM budget safe on all gens.
    return pl.pallas_call(
        kernel,
        out_shape=jax.ShapeDtypeStruct((M, N), jnp.float32),
        grid=(M // tm,),
        in_specs=[
            pl.BlockSpec((tm, K), lambda i: (i, 0)),
            pl.BlockSpec((K, N), lambda i: (0, 0)),
            pl.BlockSpec((1, N), lambda i: (0, 0)),
        ],
        out_specs=pl.BlockSpec((tm, N), lambda i: (i, 0)),
        compiler_params=pltpu.CompilerParams(
            dimension_semantics=("parallel",),
            vmem_limit_bytes=32 * 1024 * 1024,
        ),
    )(xc, wc, b2)


# ----------------------------------------------------------------------------
# Fused head kernel: mean|log_var = (mish(x @ Wd + bd)) @ [Wm | Wl] + [bm | bl]
# The (M, latent) intermediate stays in registers/VMEM; output is one 2*latent-wide
# lane-dense slab, split in the wrapper.
# ----------------------------------------------------------------------------
def _head_kernel(x_ref, wd_ref, bd_ref, wh_ref, bh_ref, o_ref, *, compute_dtype):
    h = jnp.dot(x_ref[...], wd_ref[...], preferred_element_type=jnp.float32)
    h = _mish(h + bd_ref[...])
    out = jnp.dot(h.astype(compute_dtype), wh_ref[...],
                  preferred_element_type=jnp.float32)
    o_ref[...] = (out + bh_ref[...]).astype(o_ref.dtype)


def pallas_fused_head(x, wd, bd, wh, bh, *, compute_dtype=jnp.bfloat16):
    """x: (M, K), wd: (K, L), bd: (L,), wh: (L, 2L), bh: (2L,) -> (M, 2L) f32."""
    M, K = x.shape
    L = wd.shape[1]
    N2 = wh.shape[1]
    xc = x.astype(compute_dtype)
    wdc = wd.astype(compute_dtype)
    whc = wh.astype(compute_dtype)
    bd2 = bd.reshape(1, L).astype(jnp.float32)
    bh2 = bh.reshape(1, N2).astype(jnp.float32)
    kernel = functools.partial(_head_kernel, compute_dtype=compute_dtype)
    return pl.pallas_call(
        kernel,
        out_shape=jax.ShapeDtypeStruct((M, N2), jnp.float32),
        in_specs=[
            pl.BlockSpec((M, K), lambda: (0, 0)),
            pl.BlockSpec((K, L), lambda: (0, 0)),
            pl.BlockSpec((1, L), lambda: (0, 0)),
            pl.BlockSpec((L, N2), lambda: (0, 0)),
            pl.BlockSpec((1, N2), lambda: (0, 0)),
        ],
        out_specs=pl.BlockSpec((M, N2), lambda: (0, 0)),
    )(xc, wdc, bd2, whc, bh2)


# ----------------------------------------------------------------------------
# im2col glue in NHWC (plain JAX; strided slices fuse under jit).  Patch K index
# ordering is (kh, kw, Cin), matching the pre-permuted conv weights below.
# TODO(synk): move patch extraction inside the conv kernel (strided in-VMEM slices)
#             to drop the HBM patch materialization entirely.
# ----------------------------------------------------------------------------
def conv_out(h_in, padding, kernel_size, stride):
    return int((h_in + 2.0 * padding - (kernel_size - 1.0) - 1.0) / stride + 1.0)


def im2col_nhwc(x, kh, kw, stride, padding):
    N, H, W, C = x.shape
    Ho = conv_out(H, padding, kh, stride)
    Wo = conv_out(W, padding, kw, stride)
    xp = jnp.pad(x, ((0, 0), (padding, padding), (padding, padding), (0, 0)))
    cols = []
    for i in range(kh):
        for j in range(kw):
            cols.append(xp[:, i:i + stride * Ho:stride, j:j + stride * Wo:stride, :])
    col = jnp.stack(cols, axis=3)                      # (N, Ho, Wo, kh*kw, C)
    col = col.reshape(N * Ho * Wo, kh * kw * C)
    return col, Ho, Wo


def conv2d_mish_nhwc(x, w2, b, kh, kw, stride, padding, compute_dtype):
    """x: (N, H, W, Cin) NHWC, w2: (kh*kw*Cin, Cout), b: (Cout,) -> (N, Ho, Wo, Cout)."""
    N = x.shape[0]
    Cout = w2.shape[1]
    col, Ho, Wo = im2col_nhwc(x, kh, kw, stride, padding)   # (N*Ho*Wo, kh*kw*Cin)
    out = pallas_linear(col, w2, b, apply_mish=True, compute_dtype=compute_dtype)
    return out.reshape(N, Ho, Wo, Cout)                      # stays NHWC


# ----------------------------------------------------------------------------
# VaeEncoder
# ----------------------------------------------------------------------------
class VaeEncoderPallas:
    def __init__(self, obs_shape, channels, kernels, strides, paddings,
                 latent_dim, key, compute_dtype=jnp.bfloat16):
        self.obs_shape = obs_shape
        self.channels = channels
        self.kernels = kernels
        self.strides = strides
        self.paddings = paddings
        self.latent_dim = latent_dim
        self.compute_dtype = compute_dtype

        c_in = obs_shape[0]
        h, w = obs_shape[1], obs_shape[2]
        conv_shapes = []
        cin = c_in
        for ch, k, s, p in zip(channels, kernels, strides, paddings):
            h = conv_out(h, p, k, s)
            w = conv_out(w, p, k, s)
            conv_shapes.append((ch, cin, k, k))      # PyTorch (Cout, Cin, kh, kw)
            cin = ch
        self.conv3_hw = (h, w)
        linear_size = channels[2] * h * w

        keys = jax.random.split(key, 12)

        def init_w(k, shape, fan_in):
            bound = 1.0 / (fan_in ** 0.5)
            return jax.random.uniform(k, shape, jnp.float32, -bound, bound)

        # Conv weights: init in PyTorch layout, then pre-permute once at init to
        # (kh, kw, Cin, Cout) flattened -> matches NHWC im2col patch ordering.
        self.conv_w2, self.conv_b = [], []
        for i, ws in enumerate(conv_shapes):
            cout, cinw, kh, kw = ws
            fan_in = cinw * kh * kw
            w_pt = init_w(keys[2 * i], ws, fan_in)
            w2 = jnp.transpose(w_pt, (2, 3, 1, 0)).reshape(kh * kw * cinw, cout)
            self.conv_w2.append(w2)
            self.conv_b.append(init_w(keys[2 * i + 1], (cout,), fan_in))

        # Downsample Linear: PyTorch flattens the conv3 output in NCHW order (C,H,W).
        # We keep activations NHWC, so permute the weight ROWS once here (exactly
        # equivalent to transposing the activation every step, but free).
        down_w_pt = init_w(keys[6], (linear_size, latent_dim), linear_size)   # rows in (C,H,W)
        c3 = channels[2]
        self.down_w = (down_w_pt.reshape(c3, h, w, latent_dim)
                       .transpose(1, 2, 0, 3)
                       .reshape(h * w * c3, latent_dim))                      # rows in (H,W,C)
        self.down_b = init_w(keys[7], (latent_dim,), linear_size)

        # mean / log_var projections fused into one (latent, 2*latent) weight.
        mean_w = init_w(keys[8], (latent_dim, latent_dim), latent_dim)
        mean_b = init_w(keys[9], (latent_dim,), latent_dim)
        lvar_w = init_w(keys[10], (latent_dim, latent_dim), latent_dim)
        lvar_b = init_w(keys[11], (latent_dim,), latent_dim)
        self.head_w = jnp.concatenate([mean_w, lvar_w], axis=1)   # (L, 2L)
        self.head_b = jnp.concatenate([mean_b, lvar_b], axis=0)   # (2L,)

        # jit the whole forward: one executable, all glue fused.
        self._forward = jax.jit(self._forward_impl)

    def _forward_impl(self, x):
        x = x.reshape(-1, *self.obs_shape)                 # (N, C, H, W), like .view
        out = jnp.transpose(x, (0, 2, 3, 1))               # -> NHWC once
        for i in range(3):
            out = conv2d_mish_nhwc(out, self.conv_w2[i], self.conv_b[i],
                                   self.kernels[i], self.kernels[i],
                                   self.strides[i], self.paddings[i],
                                   self.compute_dtype)
        n = out.shape[0]
        flat = out.reshape(n, -1)                          # NHWC flatten (weights pre-permuted)
        mean_lv = pallas_fused_head(flat, self.down_w, self.down_b,
                                    self.head_w, self.head_b,
                                    compute_dtype=self.compute_dtype)
        mean = mean_lv[:, :self.latent_dim]
        log_var = mean_lv[:, self.latent_dim:]
        return mean, log_var

    def __call__(self, x):
        return self._forward(x)


if __name__ == "__main__":
    key = jax.random.PRNGKey(0)
    k_param, k_x = jax.random.split(key)

    obs_shape = (4, 16, 16)
    channels = (8, 16, 32)
    kernels = (3, 3, 3)
    strides = (2, 2, 2)
    paddings = (1, 1, 1)
    latent_dim = 32
    batch = 2

    enc = VaeEncoderPallas(obs_shape, channels, kernels, strides, paddings,
                           latent_dim, k_param)

    x = jax.random.normal(k_x, (batch, *obs_shape), dtype=jnp.float32)
    mean, log_var = enc(x)
    jax.block_until_ready(mean)
    jax.block_until_ready(log_var)
    assert mean.shape == (batch, latent_dim)
    assert log_var.shape == (batch, latent_dim)
    assert bool(jnp.all(jnp.isfinite(mean))) and bool(jnp.all(jnp.isfinite(log_var)))
    print("KERNEL_OK")
</pallas_src>

<mosaic_0001>
module attributes {stable_mosaic.version = 11 : i64} {
  func.func @_matmul_bias_kernel(%arg0: memref<128x36xbf16, #tpu.memory_space<vmem>>, %arg1: memref<36x8xbf16, #tpu.memory_space<vmem>>, %arg2: memref<1x8xf32, #tpu.memory_space<vmem>>, %arg3: memref<128x8xf32, #tpu.memory_space<vmem>>) attributes {dimension_semantics = [], scalar_prefetch = 0 : i64, scratch_operands = 0 : i64, tpu.core_type = #tpu.core_type<tc>} {
    %c0 = arith.constant 0 : index
    %c0_0 = arith.constant 0 : index
    %0 = vector.load %arg0[%c0, %c0_0] : memref<128x36xbf16, #tpu.memory_space<vmem>>, vector<128x36xbf16>
    %c0_1 = arith.constant 0 : index
    %c0_2 = arith.constant 0 : index
    %1 = vector.load %arg1[%c0_1, %c0_2] : memref<36x8xbf16, #tpu.memory_space<vmem>>, vector<36x8xbf16>
    %cst = arith.constant dense<0.000000e+00> : vector<128x8xf32>
    %2 = tpu.matmul %0, %1, %cst {dimension_numbers = #tpu.dot_dimension_numbers<[1], [0], [0], [1], [0, 0, 1, 1], [], []>} : vector<128x36xbf16>, vector<36x8xbf16>, vector<128x8xf32> -> vector<128x8xf32>
    %c0_3 = arith.constant 0 : index
    %c0_4 = arith.constant 0 : index
    %3 = vector.load %arg2[%c0_3, %c0_4] : memref<1x8xf32, #tpu.memory_space<vmem>>, vector<1x8xf32>
    %4 = vector.broadcast %3 : vector<1x8xf32> to vector<128x8xf32>
    %5 = arith.addf %2, %4 : vector<128x8xf32>
    %cst_5 = arith.constant 0.000000e+00 : f32
    %6 = vector.broadcast %cst_5 : f32 to vector<128x8xf32>
    %7 = arith.maximumf %5, %6 : vector<128x8xf32>
    %8 = math.absf %5 : vector<128x8xf32>
    %cst_6 = arith.constant 0.000000e+00 : f32
    %9 = vector.broadcast %cst_6 : f32 to vector<128x8xf32>
    %10 = arith.subf %9, %8 : vector<128x8xf32>
    %11 = math.exp %10 : vector<128x8xf32>
    %12 = math.log1p %11 : vector<128x8xf32>
    %13 = arith.addf %7, %12 : vector<128x8xf32>
    %14 = math.tanh %13 : vector<128x8xf32>
    %15 = arith.mulf %5, %14 : vector<128x8xf32>
    %c0_7 = arith.constant 0 : index
    %c0_8 = arith.constant 0 : index
    %16 = vector.load %arg3[%c0_7, %c0_8] : memref<128x8xf32, #tpu.memory_space<vmem>>, vector<128x8xf32>
    tpu.vector_store %arg3[%c0_7, %c0_8], %15 {strides = array<i32>} : memref<128x8xf32, #tpu.memory_space<vmem>>, vector<128x8xf32>,
    return
  }
}

module attributes {stable_mosaic.version = 11 : i64} {
  func.func @_matmul_bias_kernel(%arg0: memref<32x72xbf16, #tpu.memory_space<vmem>>, %arg1: memref<72x16xbf16, #tpu.memory_space<vmem>>, %arg2: memref<1x16xf32, #tpu.memory_space<vmem>>, %arg3: memref<32x16xf32, #tpu.memory_space<vmem>>) attributes {dimension_semantics = [], scalar_prefetch = 0 : i64, scratch_operands = 0 : i64, tpu.core_type = #tpu.core_type<tc>} {
    %c0 = arith.constant 0 : index
    %c0_0 = arith.constant 0 : index
    %0 = vector.load %arg0[%c0, %c0_0] : memref<32x72xbf16, #tpu.memory_space<vmem>>, vector<32x72xbf16>
    %c0_1 = arith.constant 0 : index
    %c0_2 = arith.constant 0 : index
    %1 = vector.load %arg1[%c0_1, %c0_2] : memref<72x16xbf16, #tpu.memory_space<vmem>>, vector<72x16xbf16>
    %cst = arith.constant dense<0.000000e+00> : vector<32x16xf32>
    %2 = tpu.matmul %0, %1, %cst {dimension_numbers = #tpu.dot_dimension_numbers<[1], [0], [0], [1], [0, 0, 1, 1], [], []>} : vector<32x72xbf16>, vector<72x16xbf16>, vector<32x16xf32> -> vector<32x16xf32>
    %c0_3 = arith.constant 0 : index
    %c0_4 = arith.constant 0 : index
    %3 = vector.load %arg2[%c0_3, %c0_4] : memref<1x16xf32, #tpu.memory_space<vmem>>, vector<1x16xf32>
    %4 = vector.broadcast %3 : vector<1x16xf32> to vector<32x16xf32>
    %5 = arith.addf %2, %4 : vector<32x16xf32>
    %cst_5 = arith.constant 0.000000e+00 : f32
    %6 = vector.broadcast %cst_5 : f32 to vector<32x16xf32>
    %7 = arith.maximumf %5, %6 : vector<32x16xf32>
    %8 = math.absf %5 : vector<32x16xf32>
    %cst_6 = arith.constant 0.000000e+00 : f32
    %9 = vector.broadcast %cst_6 : f32 to vector<32x16xf32>
    %10 = arith.subf %9, %8 : vector<32x16xf32>
    %11 = math.exp %10 : vector<32x16xf32>
    %12 = math.log1p %11 : vector<32x16xf32>
    %13 = arith.addf %7, %12 : vector<32x16xf32>
    %14 = math.tanh %13 : vector<32x16xf32>
    %15 = arith.mulf %5, %14 : vector<32x16xf32>
    %c0_7 = arith.constant 0 : index
    %c0_8 = arith.constant 0 : index
    %16 = vector.load %arg3[%c0_7, %c0_8] : memref<32x16xf32, #tpu.memory_space<vmem>>, vector<32x16xf32>
    tpu.vector_store %arg3[%c0_7, %c0_8], %15 {strides = array<i32>} : memref<32x16xf32, #tpu.memory_space<vmem>>, vector<32x16xf32>,
    return
  }
}

module attributes {stable_mosaic.version = 11 : i64} {
  func.func @_matmul_bias_kernel(%arg0: memref<8x144xbf16, #tpu.memory_space<vmem>>, %arg1: memref<144x32xbf16, #tpu.memory_space<vmem>>, %arg2: memref<1x32xf32, #tpu.memory_space<vmem>>, %arg3: memref<8x32xf32, #tpu.memory_space<vmem>>) attributes {dimension_semantics = [], scalar_prefetch = 0 : i64, scratch_operands = 0 : i64, tpu.core_type = #tpu.core_type<tc>} {
    %c0 = arith.constant 0 : index
    %c0_0 = arith.constant 0 : index
    %0 = vector.load %arg0[%c0, %c0_0] : memref<8x144xbf16, #tpu.memory_space<vmem>>, vector<8x144xbf16>
    %c0_1 = arith.constant 0 : index
    %c0_2 = arith.constant 0 : index
    %1 = vector.load %arg1[%c0_1, %c0_2] : memref<144x32xbf16, #tpu.memory_space<vmem>>, vector<144x32xbf16>
    %cst = arith.constant dense<0.000000e+00> : vector<8x32xf32>
    %2 = tpu.matmul %0, %1, %cst {dimension_numbers = #tpu.dot_dimension_numbers<[1], [0], [0], [1], [0, 0, 1, 1], [], []>} : vector<8x144xbf16>, vector<144x32xbf16>, vector<8x32xf32> -> vector<8x32xf32>
    %c0_3 = arith.constant 0 : index
    %c0_4 = arith.constant 0 : index
    %3 = vector.load %arg2[%c0_3, %c0_4] : memref<1x32xf32, #tpu.memory_space<vmem>>, vector<1x32xf32>
    %4 = vector.broadcast %3 : vector<1x32xf32> to vector<8x32xf32>
    %5 = arith.addf %2, %4 : vector<8x32xf32>
    %cst_5 = arith.constant 0.000000e+00 : f32
    %6 = vector.broadcast %cst_5 : f32 to vector<8x32xf32>
    %7 = arith.maximumf %5, %6 : vector<8x32xf32>
    %8 = math.absf %5 : vector<8x32xf32>
    %cst_6 = arith.constant 0.000000e+00 : f32
    %9 = vector.broadcast %cst_6 : f32 to vector<8x32xf32>
    %10 = arith.subf %9, %8 : vector<8x32xf32>
    %11 = math.exp %10 : vector<8x32xf32>
    %12 = math.log1p %11 : vector<8x32xf32>
    %13 = arith.addf %7, %12 : vector<8x32xf32>
    %14 = math.tanh %13 : vector<8x32xf32>
    %15 = arith.mulf %5, %14 : vector<8x32xf32>
    %c0_7 = arith.constant 0 : index
    %c0_8 = arith.constant 0 : index
    %16 = vector.load %arg3[%c0_7, %c0_8] : memref<8x32xf32, #tpu.memory_space<vmem>>, vector<8x32xf32>
    tpu.vector_store %arg3[%c0_7, %c0_8], %15 {strides = array<i32>} : memref<8x32xf32, #tpu.memory_space<vmem>>, vector<8x32xf32>,
    return
  }
}

module attributes {stable_mosaic.version = 11 : i64} {
  func.func @_head_kernel(%arg0: memref<2x128xbf16, #tpu.memory_space<vmem>>, %arg1: memref<128x32xbf16, #tpu.memory_space<vmem>>, %arg2: memref<1x32xf32, #tpu.memory_space<vmem>>, %arg3: memref<32x64xbf16, #tpu.memory_space<vmem>>, %arg4: memref<1x64xf32, #tpu.memory_space<vmem>>, %arg5: memref<2x64xf32, #tpu.memory_space<vmem>>) attributes {dimension_semantics = [], scalar_prefetch = 0 : i64, scratch_operands = 0 : i64, tpu.core_type = #tpu.core_type<tc>} {
    %c0 = arith.constant 0 : index
    %c0_0 = arith.constant 0 : index
    %0 = vector.load %arg0[%c0, %c0_0] : memref<2x128xbf16, #tpu.memory_space<vmem>>, vector<2x128xbf16>
    %c0_1 = arith.constant 0 : index
    %c0_2 = arith.constant 0 : index
    %1 = vector.load %arg1[%c0_1, %c0_2] : memref<128x32xbf16, #tpu.memory_space<vmem>>, vector<128x32xbf16>
    %cst = arith.constant dense<0.000000e+00> : vector<2x32xf32>
    %2 = tpu.matmul %0, %1, %cst {dimension_numbers = #tpu.dot_dimension_numbers<[1], [0], [0], [1], [0, 0, 1, 1], [], []>} : vector<2x128xbf16>, vector<128x32xbf16>, vector<2x32xf32> -> vector<2x32xf32>
    %c0_3 = arith.constant 0 : index
    %c0_4 = arith.constant 0 : index
    %3 = vector.load %arg2[%c0_3, %c0_4] : memref<1x32xf32, #tpu.memory_space<vmem>>, vector<1x32xf32>
    %4 = vector.broadcast %3 : vector<1x32xf32> to vector<2x32xf32>
    %5 = arith.addf %2, %4 : vector<2x32xf32>
    %cst_5 = arith.constant 0.000000e+00 : f32
    %6 = vector.broadcast %cst_5 : f32 to vector<2x32xf32>
    %7 = arith.maximumf %5, %6 : vector<2x32xf32>
    %8 = math.absf %5 : vector<2x32xf32>
    %cst_6 = arith.constant 0.000000e+00 : f32
    %9 = vector.broadcast %cst_6 : f32 to vector<2x32xf32>
    %10 = arith.subf %9, %8 : vector<2x32xf32>
    %11 = math.exp %10 : vector<2x32xf32>
    %12 = math.log1p %11 : vector<2x32xf32>
    %13 = arith.addf %7, %12 : vector<2x32xf32>
    %14 = math.tanh %13 : vector<2x32xf32>
    %15 = arith.mulf %5, %14 : vector<2x32xf32>
    %16 = arith.truncf %15 : vector<2x32xf32> to vector<2x32xbf16>
    %c0_7 = arith.constant 0 : index
    %c0_8 = arith.constant 0 : index
    %17 = vector.load %arg3[%c0_7, %c0_8] : memref<32x64xbf16, #tpu.memory_space<vmem>>, vector<32x64xbf16>
    %cst_9 = arith.constant dense<0.000000e+00> : vector<2x64xf32>
    %18 = tpu.matmul %16, %17, %cst_9 {dimension_numbers = #tpu.dot_dimension_numbers<[1], [0], [0], [1], [0, 0, 1, 1], [], []>} : vector<2x32xbf16>, vector<32x64xbf16>, vector<2x64xf32> -> vector<2x64xf32>
    %c0_10 = arith.constant 0 : index
    %c0_11 = arith.constant 0 : index
    %19 = vector.load %arg4[%c0_10, %c0_11] : memref<1x64xf32, #tpu.memory_space<vmem>>, vector<1x64xf32>
    %20 = vector.broadcast %19 : vector<1x64xf32> to vector<2x64xf32>
    %21 = arith.addf %18, %20 : vector<2x64xf32>
    %c0_12 = arith.constant 0 : index
    %c0_13 = arith.constant 0 : index
    %22 = vector.load %arg5[%c0_12, %c0_13] : memref<2x64xf32, #tpu.memory_space<vmem>>, vector<2x64xf32>
    tpu.vector_store %arg5[%c0_12, %c0_13], %21 {strides = array<i32>} : memref<2x64xf32, #tpu.memory_space<vmem>>, vector<2x64xf32>,
    return
  }
}

</mosaic_0001>

<llo_original>
// kernel: _forward_impl.4
$region0: #{_forward_impl.4}
  #allocation0 [shape = 'u32[]', space=smem, size = 0x4, offset = 0x4, fixed_abs, tag = 'smem constant byte address 0x4 - core index']
  #allocation1 [shape = 'u32[144,128]{1,0:T(1,128)}', space=vmem, size = 0x12000, scoped, tag = 'internal scratch']
  %s0 = inlined_call_operand.vmem [shape: bf16[128,36], index: 0, kind: input, shape index: {}]
  %s1 = inlined_call_operand.vmem [shape: bf16[36,8], index: 1, kind: input, shape index: {}]
  %s2 = inlined_call_operand.vmem [shape: f32[1,8], index: 2, kind: input, shape index: {}]
  %s3 = inlined_call_operand.vmem [shape: f32[128,8], index: 3, kind: output, shape index: {}]
  %s4 = sld [smem:[#allocation0]]
  $region22: #{_forward_impl.4} parent=0
    _
  %s6 = ssub.s32 1, %s4
  %s7 = scalar_select 0, %s6, %s4
  // Predicated region
  $region2: #{_forward_impl.4} parent=0 // pred_check
    _
  $region3: #{_forward_impl.4} parent=0 // pred_check_branch
    %9 = sbr.rel (0) target = $region5
  $region4: #{_forward_impl.4} parent=0 // pred_region
    _
  $region5: #{_forward_impl.4} parent=0 // pred_fallthru
    _
  // Predicated region
  $region6: #{_forward_impl.4} parent=0 // pred_check
    _
  $region7: #{_forward_impl.4} parent=0 // pred_check_branch
    %11 = sbr.rel (0) target = $region9
  $region8: #{_forward_impl.4} parent=0 // pred_region
    _
  $region9: #{_forward_impl.4} parent=0 // pred_fallthru
    _
  // Predicated region
  $region10: #{_forward_impl.4} parent=0 // pred_check
    _
  $region11: #{_forward_impl.4} parent=0 // pred_check_branch
    %13 = sbr.rel (0) target = $region13
  $region12: #{_forward_impl.4} parent=0 // pred_region
    _
  $region13: #{_forward_impl.4} parent=0 // pred_fallthru
    _
  %v15 = vld [vmem:[%s0] sm:$0xf]
  %v16 = vld [vmem:[%s0 + $0x4] sm:$0xf]
  %v17 = vld [vmem:[%s0 + $0x8] sm:$0xf]
  %v18 = vld [vmem:[%s0 + $0xc] sm:$0xf]
  %v19 = vld [vmem:[%s0 + $0x10] sm:$0xf]
  %v20 = vld [vmem:[%s0 + $0x14] sm:$0xf]
  %v21 = vld [vmem:[%s0 + $0x18] sm:$0xf]
  %v22 = vld [vmem:[%s0 + $0x1c] sm:$0xf]
  %v23 = vld [vmem:[%s0 + $0x20] sm:$0xf]
  %v24 = vld [vmem:[%s0 + $0x24] sm:$0xf]
  %v25 = vld [vmem:[%s0 + $0x28] sm:$0xf]
  %v26 = vld [vmem:[%s0 + $0x2c] sm:$0xf]
  %v27 = vld [vmem:[%s0 + $0x30] sm:$0xf]
  %v28 = vld [vmem:[%s0 + $0x34] sm:$0xf]
  %v29 = vld [vmem:[%s0 + $0x38] sm:$0xf]
  %v30 = vld [vmem:[%s0 + $0x3c] sm:$0xf]
  %v31 = vld [vmem:[%s1] sm:$0xf]
  %v32 = vld [vmem:[%s1 + $0x4] sm:$0xf]
  %v33 = vld [vmem:[%s1 + $0x8] sm:$0xf]
  %v34 = vld [vmem:[%s1 + $0xc] sm:$0xf]
  %v35 = vld [vmem:[%s1 + $0x10] sm:$0x3]
  %v36 = vld [vmem:[%s2] sm:$0x1]
  %v38 = vlaneseq
  %v39 = vshrl.u32 %v38, 7
  %v40 = vsub.s32 0, %v39
  %v41 = vrot.slane %v36, %v40
  %v59 = vunpack.c.l.b16 %v15
  %v60 = vunpack.c.l.b16 %v16
  %v61 = vunpack.c.l.b16 %v17
  %v62 = vunpack.c.l.b16 %v18
  %v63 = vunpack.c.l.b16 %v19
  %v64 = vunpack.c.l.b16 %v20
  %v65 = vunpack.c.l.b16 %v21
  %v66 = vunpack.c.l.b16 %v22
  %v67 = vunpack.c.l.b16 %v23
  %v68 = vunpack.c.l.b16 %v24
  %v69 = vunpack.c.l.b16 %v25
  %v70 = vunpack.c.l.b16 %v26
  %v71 = vunpack.c.l.b16 %v27
  %v72 = vunpack.c.l.b16 %v28
  %v73 = vunpack.c.l.b16 %v29
  %v74 = vunpack.c.l.b16 %v30
  %v75 = vpack.c.b16 %v60, %v59
  %v76 = vpack.c.b16 %v62, %v61
  %v77 = vpack.c.b16 %v64, %v63
  %v78 = vpack.c.b16 %v66, %v65
  %v79 = vpack.c.b16 %v68, %v67
  %v80 = vpack.c.b16 %v70, %v69
  %v81 = vpack.c.b16 %v72, %v71
  %v82 = vpack.c.b16 %v74, %v73
  %v88 = vunpack.c.l.b16 %v31
  %v89 = vunpack.c.l.b16 %v32
  %v90 = vunpack.c.l.b16 %v33
  %v91 = vunpack.c.l.b16 %v34
  %v92 = vunpack.c.l.b16 %v35
  %v93 = vpack.c.b16 %v89, %v88
  %v94 = vpack.c.b16 %v91, %v90
  %v95 = vpack.c.b16 %v92, %v92
  %vm98 = vcmask 293888
  %v100 = vsel %vm98, %v75, 0
  %v103 = vsel %vm98, %v76, 0
  %v106 = vsel %vm98, %v77, 0
  %v109 = vsel %vm98, %v78, 0
  %v112 = vsel %vm98, %v79, 0
  %v115 = vsel %vm98, %v80, 0
  %v118 = vsel %vm98, %v81, 0
  %v121 = vsel %vm98, %v82, 0
  %vm123 = vcmask 1041408
  %v125 = vsel %vm123, %v95, 0
  %127 = vmatprep.subr.bf16.mxu0 0
  %128 = vmatpush1.bf16.msra.mxu0 0
  %129 = vmatprep.subr.bf16.mxu0 0
  %130 = vmatpush1.bf16.msra.mxu0 0
  %131 = vmatprep.subr.bf16.mxu0 0
  %132 = vmatpush1.bf16.msra.mxu0 0
  %133 = vmatprep.subr.bf16.mxu0 0
  %134 = vmatpush1.bf16.msra.mxu0 0
  %135 = vmatprep.subr.bf16.mxu0 0
  %136 = vmatpush1.bf16.msra.mxu0 0
  %137 = vmatprep.subr.bf16.mxu0 0
  %138 = vmatpush1.bf16.msra.mxu0 %v125
  %139 = vmatprep.subr.bf16.mxu0 0
  %140 = vmatpush1.bf16.msra.mxu0 %v94
  %141 = vmatprep.subr.bf16.mxu0 0
  %142 = vmatpush1.bf16.msra.mxu0 %v93
  %143 = vmatprep.subr.bf16.mxu0 0
  %144 = vmatpush2.bf16.msra.mxu0 0
  %145 = vmatprep.subr.bf16.mxu0 0
  %146 = vmatpush2.bf16.msra.mxu0 0
  %147 = vmatprep.subr.bf16.mxu0 0
  %148 = vmatpush2.bf16.msra.mxu0 0
  %149 = vmatprep.subr.bf16.mxu0 0
  %150 = vmatpush2.bf16.msra.mxu0 0
  %151 = vmatprep.subr.bf16.mxu0 0
  %152 = vmatpush2.bf16.msra.mxu0 0
  %153 = vmatprep.subr.bf16.mxu0 0
  %154 = vmatpush2.bf16.msra.mxu0 0
  %155 = vmatprep.subr.bf16.mxu0 0
  %156 = vmatpush2.bf16.msra.mxu0 0
  %157 = vmatprep.subr.bf16.mxu0 0
  %158 = vmatpush2.bf16.msra.mxu0 0
  %159 = vmatprep.mubr.bf16.mxu0 0
  %160 = vmatmul.mubr.bf16.gmra.mxu0 %v100
  %v161 = vpop.f32.mrf.mxu0
  %v162 = vadd.f32 %v41, %v161
  %v163 = vpop.f32.mrf.mxu0
  %v164 = vpop.f32.mrf.mxu0
  %v165 = vadd.f32 %v41, %v164
  %v166 = vpop.f32.mrf.mxu0
  %167 = vmatprep.mubr.bf16.mxu0 0
  %168 = vmatmul.mubr.bf16.gmra.mxu0 %v103
  %v169 = vpop.f32.mrf.mxu0
  %v170 = vadd.f32 %v41, %v169
  %v171 = vpop.f32.mrf.mxu0
  %v172 = vpop.f32.mrf.mxu0
  %v173 = vadd.f32 %v41, %v172
  %v174 = vpop.f32.mrf.mxu0
  %175 = vmatprep.mubr.bf16.mxu0 0
  %176 = vmatmul.mubr.bf16.gmra.mxu0 %v106
  %v177 = vpop.f32.mrf.mxu0
  %v178 = vadd.f32 %v41, %v177
  %v179 = vpop.f32.mrf.mxu0
  %v180 = vpop.f32.mrf.mxu0
  %v181 = vadd.f32 %v41, %v180
  %v182 = vpop.f32.mrf.mxu0
  %183 = vmatprep.mubr.bf16.mxu0 0
  %184 = vmatmul.mubr.bf16.gmra.mxu0 %v109
  %v185 = vpop.f32.mrf.mxu0
  %v186 = vadd.f32 %v41, %v185
  %v187 = vpop.f32.mrf.mxu0
  %v188 = vpop.f32.mrf.mxu0
  %v189 = vadd.f32 %v41, %v188
  %v190 = vpop.f32.mrf.mxu0
  %191 = vmatprep.mubr.bf16.mxu0 0
  %192 = vmatmul.mubr.bf16.gmra.mxu0 %v112
  %v193 = vpop.f32.mrf.mxu0
  %v194 = vadd.f32 %v41, %v193
  %v195 = vpop.f32.mrf.mxu0
  %v196 = vpop.f32.mrf.mxu0
  %v197 = vadd.f32 %v41, %v196
  %v198 = vpop.f32.mrf.mxu0
  %199 = vmatprep.mubr.bf16.mxu0 0
  %200 = vmatmul.mubr.bf16.gmra.mxu0 %v115
  %v201 = vpop.f32.mrf.mxu0
  %v202 = vadd.f32 %v41, %v201
  %v203 = vpop.f32.mrf.mxu0
  %v204 = vpop.f32.mrf.mxu0
  %v205 = vadd.f32 %v41, %v204
  %v206 = vpop.f32.mrf.mxu0
  %207 = vmatprep.mubr.bf16.mxu0 0
  %208 = vmatmul.mubr.bf16.gmra.mxu0 %v118
  %v209 = vpop.f32.mrf.mxu0
  %v210 = vadd.f32 %v41, %v209
  %v211 = vpop.f32.mrf.mxu0
  %v212 = vpop.f32.mrf.mxu0
  %v213 = vadd.f32 %v41, %v212
  %v214 = vpop.f32.mrf.mxu0
  %215 = vmatprep.mubr.bf16.mxu0 0
  %216 = vmatmul.mubr.bf16.gmra.mxu0 %v121
  %v217 = vpop.f32.mrf.mxu0
  %v218 = vadd.f32 %v41, %v217
  %v219 = vpop.f32.mrf.mxu0
  %v220 = vpop.f32.mrf.mxu0
  %v221 = vadd.f32 %v41, %v220
  %v222 = vpop.f32.mrf.mxu0
  %223 = vdwg.mxu0
  %v224 = vmax.f32 %v162, 0.0
  %v225 = vmax.f32 %v165, 0.0
  %v226 = vmax.f32 %v170, 0.0
  %v227 = vmax.f32 %v173, 0.0
  %v228 = vmax.f32 %v178, 0.0
  %v229 = vmax.f32 %v181, 0.0
  %v230 = vmax.f32 %v186, 0.0
  %v231 = vmax.f32 %v189, 0.0
  %v232 = vmax.f32 %v194, 0.0
  %v233 = vmax.f32 %v197, 0.0
  %v234 = vmax.f32 %v202, 0.0
  %v235 = vmax.f32 %v205, 0.0
  %v236 = vmax.f32 %v210, 0.0
  %v237 = vmax.f32 %v213, 0.0
  %v238 = vmax.f32 %v218, 0.0
  %v239 = vmax.f32 %v221, 0.0
  %v240 = vand.u32 2147483647, %v162
  %v241 = vand.u32 2147483647, %v165
  %v242 = vand.u32 2147483647, %v170
  %v243 = vand.u32 2147483647, %v173
  %v244 = vand.u32 2147483647, %v178
  %v245 = vand.u32 2147483647, %v181
  %v246 = vand.u32 2147483647, %v186
  %v247 = vand.u32 2147483647, %v189
  %v248 = vand.u32 2147483647, %v194
  %v249 = vand.u32 2147483647, %v197
  %v250 = vand.u32 2147483647, %v202
  %v251 = vand.u32 2147483647, %v205
  %v252 = vand.u32 2147483647, %v210
  %v253 = vand.u32 2147483647, %v213
  %v254 = vand.u32 2147483647, %v218
  %v255 = vand.u32 2147483647, %v221
  %v256 = vsub.f32 0.0, %v240
  %v257 = vsub.f32 0.0, %v241
  %v258 = vsub.f32 0.0, %v242
  %v259 = vsub.f32 0.0, %v243
  %v260 = vsub.f32 0.0, %v244
  %v261 = vsub.f32 0.0, %v245
  %v262 = vsub.f32 0.0, %v246
  %v263 = vsub.f32 0.0, %v247
  %v264 = vsub.f32 0.0, %v248
  %v265 = vsub.f32 0.0, %v249
  %v266 = vsub.f32 0.0, %v250
  %v267 = vsub.f32 0.0, %v251
  %v268 = vsub.f32 0.0, %v252
  %v269 = vsub.f32 0.0, %v253
  %v270 = vsub.f32 0.0, %v254
  %v271 = vsub.f32 0.0, %v255
  %v272 = vmul.f32 %v256, 1.442695
  %v273 = vpow.pop %v272
  %v274 = vmul.f32 %v257, 1.442695
  %v275 = vpow.pop %v274
  %v276 = vmul.f32 %v258, 1.442695
  %v277 = vpow.pop %v276
  %v278 = vmul.f32 %v259, 1.442695
  %v279 = vpow.pop %v278
  %v280 = vmul.f32 %v260, 1.442695
  %v281 = vpow.pop %v280
  %v282 = vmul.f32 %v261, 1.442695
  %v283 = vpow.pop %v282
  %v284 = vmul.f32 %v262, 1.442695
  %v285 = vpow.pop %v284
  %v286 = vmul.f32 %v263, 1.442695
  %v287 = vpow.pop %v286
  %v288 = vmul.f32 %v264, 1.442695
  %v289 = vpow.pop %v288
  %v290 = vmul.f32 %v265, 1.442695
  %v291 = vpow.pop %v290
  %v292 = vmul.f32 %v266, 1.442695
  %v293 = vpow.pop %v292
  %v294 = vmul.f32 %v267, 1.442695
  %v295 = vpow.pop %v294
  %v296 = vmul.f32 %v268, 1.442695
  %v297 = vpow.pop %v296
  %v298 = vmul.f32 %v269, 1.442695
  %v299 = vpow.pop %v298
  %v300 = vmul.f32 %v270, 1.442695
  %v301 = vpow.pop %v300
  %v302 = vmul.f32 %v271, 1.442695
  %v303 = vpow.pop %v302
  %v304 = vadd.f32 %v273, 1.0
  %v305 = vlog2.pop %v304
  %v306 = vmul.f32 %v305, 0.6931472
  %v307 = vmul.f32 -0.5, %v273
  %v308 = vadd.f32 %v307, 1.0
  %v309 = vmul.f32 %v308, %v273
  %v310 = vand.u32 2147483647, %v273
  %vm311 = vcmp.lt.f32.partialorder %v310, 0.0004427343
  %v312 = vsel %vm311, %v309, %v306
  %v313 = vadd.f32 %v275, 1.0
  %v314 = vlog2.pop %v313
  %v315 = vmul.f32 %v314, 0.6931472
  %v316 = vmul.f32 -0.5, %v275
  %v317 = vadd.f32 %v316, 1.0
  %v318 = vmul.f32 %v317, %v275
  %v319 = vand.u32 2147483647, %v275
  %vm320 = vcmp.lt.f32.partialorder %v319, 0.0004427343
  %v321 = vsel %vm320, %v318, %v315
  %v322 = vadd.f32 %v277, 1.0
  %v323 = vlog2.pop %v322
  %v324 = vmul.f32 %v323, 0.6931472
  %v325 = vmul.f32 -0.5, %v277
  %v326 = vadd.f32 %v325, 1.0
  %v327 = vmul.f32 %v326, %v277
  %v328 = vand.u32 2147483647, %v277
  %vm329 = vcmp.lt.f32.partialorder %v328, 0.0004427343
  %v330 = vsel %vm329, %v327, %v324
  %v331 = vadd.f32 %v279, 1.0
  %v332 = vlog2.pop %v331
  %v333 = vmul.f32 %v332, 0.6931472
  %v334 = vmul.f32 -0.5, %v279
  %v335 = vadd.f32 %v334, 1.0
  %v336 = vmul.f32 %v335, %v279
  %v337 = vand.u32 2147483647, %v279
  %vm338 = vcmp.lt.f32.partialorder %v337, 0.0004427343
  %v339 = vsel %vm338, %v336, %v333
  %v340 = vadd.f32 %v281, 1.0
  %v341 = vlog2.pop %v340
  %v342 = vmul.f32 %v341, 0.6931472
  %v343 = vmul.f32 -0.5, %v281
  %v344 = vadd.f32 %v343, 1.0
  %v345 = vmul.f32 %v344, %v281
  %v346 = vand.u32 2147483647, %v281
  %vm347 = vcmp.lt.f32.partialorder %v346, 0.0004427343
  %v348 = vsel %vm347, %v345, %v342
  %v349 = vadd.f32 %v283, 1.0
  %v350 = vlog2.pop %v349
  %v351 = vmul.f32 %v350, 0.6931472
  %v352 = vmul.f32 -0.5, %v283
  %v353 = vadd.f32 %v352, 1.0
  %v354 = vmul.f32 %v353, %v283
  %v355 = vand.u32 2147483647, %v283
  %vm356 = vcmp.lt.f32.partialorder %v355, 0.0004427343
  %v357 = vsel %vm356, %v354, %v351
  %v358 = vadd.f32 %v285, 1.0
  %v359 = vlog2.pop %v358
  %v360 = vmul.f32 %v359, 0.6931472
  %v361 = vmul.f32 -0.5, %v285
  %v362 = vadd.f32 %v361, 1.0
  %v363 = vmul.f32 %v362, %v285
  %v364 = vand.u32 2147483647, %v285
  %vm365 = vcmp.lt.f32.partialorder %v364, 0.0004427343
  %v366 = vsel %vm365, %v363, %v360
  %v367 = vadd.f32 %v287, 1.0
  %v368 = vlog2.pop %v367
  %v369 = vmul.f32 %v368, 0.6931472
  %v370 = vmul.f32 -0.5, %v287
  %v371 = vadd.f32 %v370, 1.0
  %v372 = vmul.f32 %v371, %v287
  %v373 = vand.u32 2147483647, %v287
  %vm374 = vcmp.lt.f32.partialorder %v373, 0.0004427343
  %v375 = vsel %vm374, %v372, %v369
  %v376 = vadd.f32 %v289, 1.0
  %v377 = vlog2.pop %v376
  %v378 = vmul.f32 %v377, 0.6931472
  %v379 = vmul.f32 -0.5, %v289
  %v380 = vadd.f32 %v379, 1.0
  %v381 = vmul.f32 %v380, %v289
  %v382 = vand.u32 2147483647, %v289
  %vm383 = vcmp.lt.f32.partialorder %v382, 0.0004427343
  %v384 = vsel %vm383, %v381, %v378
  %v385 = vadd.f32 %v291, 1.0
  %v386 = vlog2.pop %v385
  %v387 = vmul.f32 %v386, 0.6931472
  %v388 = vmul.f32 -0.5, %v291
  %v389 = vadd.f32 %v388, 1.0
  %v390 = vmul.f32 %v389, %v291
  %v391 = vand.u32 2147483647, %v291
  %vm392 = vcmp.lt.f32.partialorder %v391, 0.0004427343
  %v393 = vsel %vm392, %v390, %v387
  %v394 = vadd.f32 %v293, 1.0
  %v395 = vlog2.pop %v394
  %v396 = vmul.f32 %v395, 0.6931472
  %v397 = vmul.f32 -0.5, %v293
  %v398 = vadd.f32 %v397, 1.0
  %v399 = vmul.f32 %v398, %v293
  %v400 = vand.u32 2147483647, %v293
  %vm401 = vcmp.lt.f32.partialorder %v400, 0.0004427343
  %v402 = vsel %vm401, %v399, %v396
  %v403 = vadd.f32 %v295, 1.0
  %v404 = vlog2.pop %v403
  %v405 = vmul.f32 %v404, 0.6931472
  %v406 = vmul.f32 -0.5, %v295
  %v407 = vadd.f32 %v406, 1.0
  %v408 = vmul.f32 %v407, %v295
  %v409 = vand.u32 2147483647, %v295
  %vm410 = vcmp.lt.f32.partialorder %v409, 0.0004427343
  %v411 = vsel %vm410, %v408, %v405
  %v412 = vadd.f32 %v297, 1.0
  %v413 = vlog2.pop %v412
  %v414 = vmul.f32 %v413, 0.6931472
  %v415 = vmul.f32 -0.5, %v297
  %v416 = vadd.f32 %v415, 1.0
  %v417 = vmul.f32 %v416, %v297
  %v418 = vand.u32 2147483647, %v297
  %vm419 = vcmp.lt.f32.partialorder %v418, 0.0004427343
  %v420 = vsel %vm419, %v417, %v414
  %v421 = vadd.f32 %v299, 1.0
  %v422 = vlog2.pop %v421
  %v423 = vmul.f32 %v422, 0.6931472
  %v424 = vmul.f32 -0.5, %v299
  %v425 = vadd.f32 %v424, 1.0
  %v426 = vmul.f32 %v425, %v299
  %v427 = vand.u32 2147483647, %v299
  %vm428 = vcmp.lt.f32.partialorder %v427, 0.0004427343
  %v429 = vsel %vm428, %v426, %v423
  %v430 = vadd.f32 %v301, 1.0
  %v431 = vlog2.pop %v430
  %v432 = vmul.f32 %v431, 0.6931472
  %v433 = vmul.f32 -0.5, %v301
  %v434 = vadd.f32 %v433, 1.0
  %v435 = vmul.f32 %v434, %v301
  %v436 = vand.u32 2147483647, %v301
  %vm437 = vcmp.lt.f32.partialorder %v436, 0.0004427343
  %v438 = vsel %vm437, %v435, %v432
  %v439 = vadd.f32 %v303, 1.0
  %v440 = vlog2.pop %v439
  %v441 = vmul.f32 %v440, 0.6931472
  %v442 = vmul.f32 -0.5, %v303
  %v443 = vadd.f32 %v442, 1.0
  %v444 = vmul.f32 %v443, %v303
  %v445 = vand.u32 2147483647, %v303
  %vm446 = vcmp.lt.f32.partialorder %v445, 0.0004427343
  %v447 = vsel %vm446, %v444, %v441
  %v448 = vadd.f32 %v224, %v312
  %v449 = vadd.f32 %v225, %v321
  %v450 = vadd.f32 %v226, %v330
  %v451 = vadd.f32 %v227, %v339
  %v452 = vadd.f32 %v228, %v348
  %v453 = vadd.f32 %v229, %v357
  %v454 = vadd.f32 %v230, %v366
  %v455 = vadd.f32 %v231, %v375
  %v456 = vadd.f32 %v232, %v384
  %v457 = vadd.f32 %v233, %v393
  %v458 = vadd.f32 %v234, %v402
  %v459 = vadd.f32 %v235, %v411
  %v460 = vadd.f32 %v236, %v420
  %v461 = vadd.f32 %v237, %v429
  %v462 = vadd.f32 %v238, %v438
  %v463 = vadd.f32 %v239, %v447
  %v464 = vtanh.pop %v448
  %v465 = vtanh.pop %v449
  %v466 = vtanh.pop %v450
  %v467 = vtanh.pop %v451
  %v468 = vtanh.pop %v452
  %v469 = vtanh.pop %v453
  %v470 = vtanh.pop %v454
  %v471 = vtanh.pop %v455
  %v472 = vtanh.pop %v456
  %v473 = vtanh.pop %v457
  %v474 = vtanh.pop %v458
  %v475 = vtanh.pop %v459
  %v476 = vtanh.pop %v460
  %v477 = vtanh.pop %v461
  %v478 = vtanh.pop %v462
  %v479 = vtanh.pop %v463
  %v480 = vmul.f32 %v162, %v464
  %v481 = vmul.f32 %v165, %v465
  %v482 = vmul.f32 %v170, %v466
  %v483 = vmul.f32 %v173, %v467
  %v484 = vmul.f32 %v178, %v468
  %v485 = vmul.f32 %v181, %v469
  %v486 = vmul.f32 %v186, %v470
  %v487 = vmul.f32 %v189, %v471
  %v488 = vmul.f32 %v194, %v472
  %v489 = vmul.f32 %v197, %v473
  %v490 = vmul.f32 %v202, %v474
  %v491 = vmul.f32 %v205, %v475
  %v492 = vmul.f32 %v210, %v476
  %v493 = vmul.f32 %v213, %v477
  %v494 = vmul.f32 %v218, %v478
  %v495 = vmul.f32 %v221, %v479
  %vm496 = vcmask 64512
  %497 = vst.msk [vmem:[%s3] sm:$0xff] %vm496, %v480
  %498 = vst.msk [vmem:[%s3 + $0x8] sm:$0xff] %vm496, %v481
  %499 = vst.msk [vmem:[%s3 + $0x10] sm:$0xff] %vm496, %v482
  %500 = vst.msk [vmem:[%s3 + $0x18] sm:$0xff] %vm496, %v483
  %501 = vst.msk [vmem:[%s3 + $0x20] sm:$0xff] %vm496, %v484
  %502 = vst.msk [vmem:[%s3 + $0x28] sm:$0xff] %vm496, %v485
  %503 = vst.msk [vmem:[%s3 + $0x30] sm:$0xff] %vm496, %v486
  %504 = vst.msk [vmem:[%s3 + $0x38] sm:$0xff] %vm496, %v487
  %505 = vst.msk [vmem:[%s3 + $0x40] sm:$0xff] %vm496, %v488
  %506 = vst.msk [vmem:[%s3 + $0x48] sm:$0xff] %vm496, %v489
  %507 = vst.msk [vmem:[%s3 + $0x50] sm:$0xff] %vm496, %v490
  %508 = vst.msk [vmem:[%s3 + $0x58] sm:$0xff] %vm496, %v491
  %509 = vst.msk [vmem:[%s3 + $0x60] sm:$0xff] %vm496, %v492
  %510 = vst.msk [vmem:[%s3 + $0x68] sm:$0xff] %vm496, %v493
  %511 = vst.msk [vmem:[%s3 + $0x70] sm:$0xff] %vm496, %v494
  %512 = vst.msk [vmem:[%s3 + $0x78] sm:$0xff] %vm496, %v495
  // Predicated region
  $region14: #{_forward_impl.4} parent=0 // pred_check
    _
  $region15: #{_forward_impl.4} parent=0 // pred_check_branch
    %514 = sbr.rel (0) target = $region17
  $region16: #{_forward_impl.4} parent=0 // pred_region
    _
  $region17: #{_forward_impl.4} parent=0 // pred_fallthru
    _
  // Predicated region
  $region18: #{_forward_impl.4} parent=0 // pred_check
    _
  $region19: #{_forward_impl.4} parent=0 // pred_check_branch
    %516 = sbr.rel (0) target = $region21
  $region20: #{_forward_impl.4} parent=0 // pred_region
    _
  $region21: #{_forward_impl.4} parent=0 // pred_fallthru
    _

// kernel: _forward_impl.5
$region0: #{_forward_impl.5}
  #allocation0 [shape = 'u32[]', space=smem, size = 0x4, offset = 0x4, fixed_abs, tag = 'smem constant byte address 0x4 - core index']
  #allocation1 [shape = 'u32[144,128]{1,0:T(1,128)}', space=vmem, size = 0x12000, scoped, tag = 'internal scratch']
  %s0 = inlined_call_operand.vmem [shape: bf16[32,72], index: 0, kind: input, shape index: {}]
  %s1 = inlined_call_operand.vmem [shape: bf16[72,16], index: 1, kind: input, shape index: {}]
  %s2 = inlined_call_operand.vmem [shape: f32[1,16], index: 2, kind: input, shape index: {}]
  %s3 = inlined_call_operand.vmem [shape: f32[32,16], index: 3, kind: output, shape index: {}]
  %s4 = sld [smem:[#allocation0]]
  $region22: #{_forward_impl.5} parent=0
    _
  %s6 = ssub.s32 1, %s4
  %s7 = scalar_select 0, %s6, %s4
  // Predicated region
  $region2: #{_forward_impl.5} parent=0 // pred_check
    _
  $region3: #{_forward_impl.5} parent=0 // pred_check_branch
    %9 = sbr.rel (0) target = $region5
  $region4: #{_forward_impl.5} parent=0 // pred_region
    _
  $region5: #{_forward_impl.5} parent=0 // pred_fallthru
    _
  // Predicated region
  $region6: #{_forward_impl.5} parent=0 // pred_check
    _
  $region7: #{_forward_impl.5} parent=0 // pred_check_branch
    %11 = sbr.rel (0) target = $region9
  $region8: #{_forward_impl.5} parent=0 // pred_region
    _
  $region9: #{_forward_impl.5} parent=0 // pred_fallthru
    _
  // Predicated region
  $region10: #{_forward_impl.5} parent=0 // pred_check
    _
  $region11: #{_forward_impl.5} parent=0 // pred_check_branch
    %13 = sbr.rel (0) target = $region13
  $region12: #{_forward_impl.5} parent=0 // pred_region
    _
  $region13: #{_forward_impl.5} parent=0 // pred_fallthru
    _
  %v15 = vld [vmem:[%s0] sm:$0xf]
  %v16 = vld [vmem:[%s0 + $0x4] sm:$0xf]
  %v17 = vld [vmem:[%s0 + $0x8] sm:$0xf]
  %v18 = vld [vmem:[%s0 + $0xc] sm:$0xf]
  %v19 = vld [vmem:[%s1] sm:$0xf]
  %v20 = vld [vmem:[%s1 + $0x4] sm:$0xf]
  %v21 = vld [vmem:[%s1 + $0x8] sm:$0xf]
  %v22 = vld [vmem:[%s1 + $0xc] sm:$0xf]
  %v23 = vld [vmem:[%s1 + $0x10] sm:$0xf]
  %v24 = vld [vmem:[%s1 + $0x14] sm:$0xf]
  %v25 = vld [vmem:[%s1 + $0x18] sm:$0xf]
  %v26 = vld [vmem:[%s1 + $0x1c] sm:$0xf]
  %v27 = vld [vmem:[%s1 + $0x20] sm:$0xf]
  %v28 = vld [vmem:[%s2] sm:$0x1]
  %v30 = vlaneseq
  %v31 = vshrl.u32 %v30, 7
  %v32 = vsub.s32 0, %v31
  %v33 = vrot.slane %v28, %v32
  %v39 = vunpack.c.l.b16 %v15
  %v40 = vunpack.c.l.b16 %v16
  %v41 = vunpack.c.l.b16 %v17
  %v42 = vunpack.c.l.b16 %v18
  %v43 = vpack.c.b16 %v40, %v39
  %v44 = vpack.c.b16 %v42, %v41
  %v54 = vunpack.c.l.b16 %v19
  %v55 = vunpack.c.l.b16 %v20
  %v56 = vunpack.c.l.b16 %v21
  %v57 = vunpack.c.l.b16 %v22
  %v58 = vunpack.c.l.b16 %v23
  %v59 = vunpack.c.l.b16 %v24
  %v60 = vunpack.c.l.b16 %v25
  %v61 = vunpack.c.l.b16 %v26
  %v62 = vunpack.c.l.b16 %v27
  %v63 = vpack.c.b16 %v55, %v54
  %v64 = vpack.c.b16 %v57, %v56
  %v65 = vpack.c.b16 %v59, %v58
  %v66 = vpack.c.b16 %v61, %v60
  %v67 = vpack.c.b16 %v62, %v62
  %vm72 = vcmask 588800
  %v74 = vsel %vm72, %v43, 0
  %v77 = vsel %vm72, %v44, 0
  %vm79 = vcmask 1043456
  %v81 = vsel %vm79, %v67, 0
  %83 = vmatprep.subr.bf16.mxu0 0
  %84 = vmatpush1.bf16.msra.mxu0 0
  %85 = vmatprep.subr.bf16.mxu0 0
  %86 = vmatpush1.bf16.msra.mxu0 0
  %87 = vmatprep.subr.bf16.mxu0 0
  %88 = vmatpush1.bf16.msra.mxu0 0
  %89 = vmatprep.subr.bf16.mxu0 0
  %90 = vmatpush1.bf16.msra.mxu0 %v81
  %91 = vmatprep.subr.bf16.mxu0 0
  %92 = vmatpush1.bf16.msra.mxu0 %v66
  %93 = vmatprep.subr.bf16.mxu0 0
  %94 = vmatpush1.bf16.msra.mxu0 %v65
  %95 = vmatprep.subr.bf16.mxu0 0
  %96 = vmatpush1.bf16.msra.mxu0 %v64
  %97 = vmatprep.subr.bf16.mxu0 0
  %98 = vmatpush1.bf16.msra.mxu0 %v63
  %99 = vmatprep.subr.bf16.mxu0 0
  %100 = vmatpush2.bf16.msra.mxu0 0
  %101 = vmatprep.subr.bf16.mxu0 0
  %102 = vmatpush2.bf16.msra.mxu0 0
  %103 = vmatprep.subr.bf16.mxu0 0
  %104 = vmatpush2.bf16.msra.mxu0 0
  %105 = vmatprep.subr.bf16.mxu0 0
  %106 = vmatpush2.bf16.msra.mxu0 0
  %107 = vmatprep.subr.bf16.mxu0 0
  %108 = vmatpush2.bf16.msra.mxu0 0
  %109 = vmatprep.subr.bf16.mxu0 0
  %110 = vmatpush2.bf16.msra.mxu0 0
  %111 = vmatprep.subr.bf16.mxu0 0
  %112 = vmatpush2.bf16.msra.mxu0 0
  %113 = vmatprep.subr.bf16.mxu0 0
  %114 = vmatpush2.bf16.msra.mxu0 0
  %115 = vmatprep.mubr.bf16.mxu0 0
  %116 = vmatmul.mubr.bf16.gmra.mxu0 %v74
  %v117 = vpop.f32.mrf.mxu0
  %v118 = vadd.f32 %v33, %v117
  %v119 = vpop.f32.mrf.mxu0
  %v120 = vpop.f32.mrf.mxu0
  %v121 = vadd.f32 %v33, %v120
  %v122 = vpop.f32.mrf.mxu0
  %123 = vmatprep.mubr.bf16.mxu0 0
  %124 = vmatmul.mubr.bf16.gmra.mxu0 %v77
  %v125 = vpop.f32.mrf.mxu0
  %v126 = vadd.f32 %v33, %v125
  %v127 = vpop.f32.mrf.mxu0
  %v128 = vpop.f32.mrf.mxu0
  %v129 = vadd.f32 %v33, %v128
  %v130 = vpop.f32.mrf.mxu0
  %131 = vdwg.mxu0
  %v132 = vmax.f32 %v118, 0.0
  %v133 = vmax.f32 %v121, 0.0
  %v134 = vmax.f32 %v126, 0.0
  %v135 = vmax.f32 %v129, 0.0
  %v136 = vand.u32 2147483647, %v118
  %v137 = vand.u32 2147483647, %v121
  %v138 = vand.u32 2147483647, %v126
  %v139 = vand.u32 2147483647, %v129
  %v140 = vsub.f32 0.0, %v136
  %v141 = vsub.f32 0.0, %v137
  %v142 = vsub.f32 0.0, %v138
  %v143 = vsub.f32 0.0, %v139
  %v144 = vmul.f32 %v140, 1.442695
  %v145 = vpow.pop %v144
  %v146 = vmul.f32 %v141, 1.442695
  %v147 = vpow.pop %v146
  %v148 = vmul.f32 %v142, 1.442695
  %v149 = vpow.pop %v148
  %v150 = vmul.f32 %v143, 1.442695
  %v151 = vpow.pop %v150
  %v152 = vadd.f32 %v145, 1.0
  %v153 = vlog2.pop %v152
  %v154 = vmul.f32 %v153, 0.6931472
  %v155 = vmul.f32 -0.5, %v145
  %v156 = vadd.f32 %v155, 1.0
  %v157 = vmul.f32 %v156, %v145
  %v158 = vand.u32 2147483647, %v145
  %vm159 = vcmp.lt.f32.partialorder %v158, 0.0004427343
  %v160 = vsel %vm159, %v157, %v154
  %v161 = vadd.f32 %v147, 1.0
  %v162 = vlog2.pop %v161
  %v163 = vmul.f32 %v162, 0.6931472
  %v164 = vmul.f32 -0.5, %v147
  %v165 = vadd.f32 %v164, 1.0
  %v166 = vmul.f32 %v165, %v147
  %v167 = vand.u32 2147483647, %v147
  %vm168 = vcmp.lt.f32.partialorder %v167, 0.0004427343
  %v169 = vsel %vm168, %v166, %v163
  %v170 = vadd.f32 %v149, 1.0
  %v171 = vlog2.pop %v170
  %v172 = vmul.f32 %v171, 0.6931472
  %v173 = vmul.f32 -0.5, %v149
  %v174 = vadd.f32 %v173, 1.0
  %v175 = vmul.f32 %v174, %v149
  %v176 = vand.u32 2147483647, %v149
  %vm177 = vcmp.lt.f32.partialorder %v176, 0.0004427343
  %v178 = vsel %vm177, %v175, %v172
  %v179 = vadd.f32 %v151, 1.0
  %v180 = vlog2.pop %v179
  %v181 = vmul.f32 %v180, 0.6931472
  %v182 = vmul.f32 -0.5, %v151
  %v183 = vadd.f32 %v182, 1.0
  %v184 = vmul.f32 %v183, %v151
  %v185 = vand.u32 2147483647, %v151
  %vm186 = vcmp.lt.f32.partialorder %v185, 0.0004427343
  %v187 = vsel %vm186, %v184, %v181
  %v188 = vadd.f32 %v132, %v160
  %v189 = vadd.f32 %v133, %v169
  %v190 = vadd.f32 %v134, %v178
  %v191 = vadd.f32 %v135, %v187
  %v192 = vtanh.pop %v188
  %v193 = vtanh.pop %v189
  %v194 = vtanh.pop %v190
  %v195 = vtanh.pop %v191
  %v196 = vmul.f32 %v118, %v192
  %v197 = vmul.f32 %v121, %v193
  %v198 = vmul.f32 %v126, %v194
  %v199 = vmul.f32 %v129, %v195
  %vm200 = vcmask 130048
  %201 = vst.msk [vmem:[%s3] sm:$0xff] %vm200, %v196
  %202 = vst.msk [vmem:[%s3 + $0x8] sm:$0xff] %vm200, %v197
  %203 = vst.msk [vmem:[%s3 + $0x10] sm:$0xff] %vm200, %v198
  %204 = vst.msk [vmem:[%s3 + $0x18] sm:$0xff] %vm200, %v199
  // Predicated region
  $region14: #{_forward_impl.5} parent=0 // pred_check
    _
  $region15: #{_forward_impl.5} parent=0 // pred_check_branch
    %206 = sbr.rel (0) target = $region17
  $region16: #{_forward_impl.5} parent=0 // pred_region
    _
  $region17: #{_forward_impl.5} parent=0 // pred_fallthru
    _
  // Predicated region
  $region18: #{_forward_impl.5} parent=0 // pred_check
    _
  $region19: #{_forward_impl.5} parent=0 // pred_check_branch
    %208 = sbr.rel (0) target = $region21
  $region20: #{_forward_impl.5} parent=0 // pred_region
    _
  $region21: #{_forward_impl.5} parent=0 // pred_fallthru
    _

// kernel: _forward_impl.6
$region0: #{_forward_impl.6}
  #allocation0 [shape = 'u32[]', space=smem, size = 0x4, offset = 0x4, fixed_abs, tag = 'smem constant byte address 0x4 - core index']
  #allocation1 [shape = 'u32[144,128]{1,0:T(1,128)}', space=vmem, size = 0x12000, scoped, tag = 'internal scratch']
  %s0 = inlined_call_operand.vmem [shape: bf16[8,144], index: 0, kind: input, shape index: {}]
  %s1 = inlined_call_operand.vmem [shape: bf16[144,32], index: 1, kind: input, shape index: {}]
  %s2 = inlined_call_operand.vmem [shape: f32[1,32], index: 2, kind: input, shape index: {}]
  %s3 = inlined_call_operand.vmem [shape: f32[8,32], index: 3, kind: output, shape index: {}]
  %s4 = sld [smem:[#allocation0]]
  $region22: #{_forward_impl.6} parent=0
    _
  %s6 = ssub.s32 1, %s4
  %s7 = scalar_select 0, %s6, %s4
  // Predicated region
  $region2: #{_forward_impl.6} parent=0 // pred_check
    _
  $region3: #{_forward_impl.6} parent=0 // pred_check_branch
    %9 = sbr.rel (0) target = $region5
  $region4: #{_forward_impl.6} parent=0 // pred_region
    _
  $region5: #{_forward_impl.6} parent=0 // pred_fallthru
    _
  // Predicated region
  $region6: #{_forward_impl.6} parent=0 // pred_check
    _
  $region7: #{_forward_impl.6} parent=0 // pred_check_branch
    %11 = sbr.rel (0) target = $region9
  $region8: #{_forward_impl.6} parent=0 // pred_region
    _
  $region9: #{_forward_impl.6} parent=0 // pred_fallthru
    _
  // Predicated region
  $region10: #{_forward_impl.6} parent=0 // pred_check
    _
  $region11: #{_forward_impl.6} parent=0 // pred_check_branch
    %13 = sbr.rel (0) target = $region13
  $region12: #{_forward_impl.6} parent=0 // pred_region
    _
  $region13: #{_forward_impl.6} parent=0 // pred_fallthru
    _
  %v15 = vld [vmem:[%s0] sm:$0xff]
  %v16 = vld [vmem:[%s1] sm:$0xf]
  %v17 = vld [vmem:[%s1 + $0x4] sm:$0xf]
  %v18 = vld [vmem:[%s1 + $0x8] sm:$0xf]
  %v19 = vld [vmem:[%s1 + $0xc] sm:$0xf]
  %v20 = vld [vmem:[%s1 + $0x10] sm:$0xf]
  %v21 = vld [vmem:[%s1 + $0x14] sm:$0xf]
  %v22 = vld [vmem:[%s1 + $0x18] sm:$0xf]
  %v23 = vld [vmem:[%s1 + $0x1c] sm:$0xf]
  %v24 = vld [vmem:[%s1 + $0x20] sm:$0xf]
  %v25 = vld [vmem:[%s1 + $0x24] sm:$0xf]
  %v26 = vld [vmem:[%s1 + $0x28] sm:$0xf]
  %v27 = vld [vmem:[%s1 + $0x2c] sm:$0xf]
  %v28 = vld [vmem:[%s1 + $0x30] sm:$0xf]
  %v29 = vld [vmem:[%s1 + $0x34] sm:$0xf]
  %v30 = vld [vmem:[%s1 + $0x38] sm:$0xf]
  %v31 = vld [vmem:[%s1 + $0x3c] sm:$0xf]
  %v32 = vld [vmem:[%s1 + $0x40] sm:$0xf]
  %v33 = vld [vmem:[%s1 + $0x44] sm:$0xf]
  %v34 = vld [vmem:[%s2] sm:$0x1]
  %v36 = vlaneseq
  %v37 = vshrl.u32 %v36, 7
  %v38 = vsub.s32 0, %v37
  %v39 = vrot.slane %v34, %v38
  %v42 = vunpack.c.l.b16 %v15
  %v43 = vunpack.c.h.b16 %v15
  %v44 = vpack.c.b16 %v42, %v42
  %v45 = vpack.c.b16 %v43, %v43
  %v65 = vunpack.c.l.b16 %v16
  %v66 = vunpack.c.l.b16 %v17
  %v67 = vunpack.c.l.b16 %v18
  %v68 = vunpack.c.l.b16 %v19
  %v69 = vunpack.c.l.b16 %v20
  %v70 = vunpack.c.l.b16 %v21
  %v71 = vunpack.c.l.b16 %v22
  %v72 = vunpack.c.l.b16 %v23
  %v73 = vunpack.c.l.b16 %v24
  %v74 = vunpack.c.l.b16 %v25
  %v75 = vunpack.c.l.b16 %v26
  %v76 = vunpack.c.l.b16 %v27
  %v77 = vunpack.c.l.b16 %v28
  %v78 = vunpack.c.l.b16 %v29
  %v79 = vunpack.c.l.b16 %v30
  %v80 = vunpack.c.l.b16 %v31
  %v81 = vunpack.c.l.b16 %v32
  %v82 = vunpack.c.l.b16 %v33
  %v83 = vpack.c.b16 %v66, %v65
  %v84 = vpack.c.b16 %v68, %v67
  %v85 = vpack.c.b16 %v70, %v69
  %v86 = vpack.c.b16 %v72, %v71
  %v87 = vpack.c.b16 %v74, %v73
  %v88 = vpack.c.b16 %v76, %v75
  %v89 = vpack.c.b16 %v78, %v77
  %v90 = vpack.c.b16 %v80, %v79
  %v91 = vpack.c.b16 %v82, %v81
  %vm101 = vcmask 130048
  %v103 = vsel %vm101, %v45, 0
  %105 = vmatprep.subr.bf16.mxu0 0
  %106 = vmatpush1.bf16.msra.mxu0 %v90
  %107 = vmatprep.subr.bf16.mxu0 0
  %108 = vmatpush1.bf16.msra.mxu0 %v89
  %109 = vmatprep.subr.bf16.mxu0 0
  %110 = vmatpush1.bf16.msra.mxu0 %v88
  %111 = vmatprep.subr.bf16.mxu0 0
  %112 = vmatpush1.bf16.msra.mxu0 %v87
  %113 = vmatprep.subr.bf16.mxu0 0
  %114 = vmatpush1.bf16.msra.mxu0 %v86
  %115 = vmatprep.subr.bf16.mxu0 0
  %116 = vmatpush1.bf16.msra.mxu0 %v85
  %117 = vmatprep.subr.bf16.mxu0 0
  %118 = vmatpush1.bf16.msra.mxu0 %v84
  %119 = vmatprep.subr.bf16.mxu0 0
  %120 = vmatpush1.bf16.msra.mxu0 %v83
  %121 = vmatprep.subr.bf16.mxu0 0
  %122 = vmatpush2.bf16.msra.mxu0 0
  %123 = vmatprep.subr.bf16.mxu0 0
  %124 = vmatpush2.bf16.msra.mxu0 0
  %125 = vmatprep.subr.bf16.mxu0 0
  %126 = vmatpush2.bf16.msra.mxu0 0
  %127 = vmatprep.subr.bf16.mxu0 0
  %128 = vmatpush2.bf16.msra.mxu0 0
  %129 = vmatprep.subr.bf16.mxu0 0
  %130 = vmatpush2.bf16.msra.mxu0 0
  %131 = vmatprep.subr.bf16.mxu0 0
  %132 = vmatpush2.bf16.msra.mxu0 0
  %133 = vmatprep.subr.bf16.mxu0 0
  %134 = vmatpush2.bf16.msra.mxu0 0
  %135 = vmatprep.subr.bf16.mxu0 0
  %136 = vmatpush2.bf16.msra.mxu0 %v91
  %137 = vmatprep.mubr.bf16.mxu0 %v103
  %138 = vmatmul.mubr.bf16.gmra.mxu0 %v44
  %v139 = vpop.f32.mrf.mxu0
  %v140 = vadd.f32 %v39, %v139
  %v141 = vpop.f32.mrf.mxu0
  %v142 = vpop.f32.mrf.mxu0
  %v143 = vpop.f32.mrf.mxu0
  %144 = vdwg.mxu0
  %v145 = vmax.f32 %v140, 0.0
  %v146 = vand.u32 2147483647, %v140
  %v147 = vsub.f32 0.0, %v146
  %v148 = vmul.f32 %v147, 1.442695
  %v149 = vpow.pop %v148
  %v150 = vadd.f32 %v149, 1.0
  %v151 = vlog2.pop %v150
  %v152 = vmul.f32 %v151, 0.6931472
  %v153 = vmul.f32 -0.5, %v149
  %v154 = vadd.f32 %v153, 1.0
  %v155 = vmul.f32 %v154, %v149
  %v156 = vand.u32 2147483647, %v149
  %vm157 = vcmp.lt.f32.partialorder %v156, 0.0004427343
  %v158 = vsel %vm157, %v155, %v152
  %v159 = vadd.f32 %v145, %v158
  %v160 = vtanh.pop %v159
  %v161 = vmul.f32 %v140, %v160
  %vm162 = vcmask 261120
  %163 = vst.msk [vmem:[%s3] sm:$0xff] %vm162, %v161
  // Predicated region
  $region14: #{_forward_impl.6} parent=0 // pred_check
    _
  $region15: #{_forward_impl.6} parent=0 // pred_check_branch
    %165 = sbr.rel (0) target = $region17
  $region16: #{_forward_impl.6} parent=0 // pred_region
    _
  $region17: #{_forward_impl.6} parent=0 // pred_fallthru
    _
  // Predicated region
  $region18: #{_forward_impl.6} parent=0 // pred_check
    _
  $region19: #{_forward_impl.6} parent=0 // pred_check_branch
    %167 = sbr.rel (0) target = $region21
  $region20: #{_forward_impl.6} parent=0 // pred_region
    _
  $region21: #{_forward_impl.6} parent=0 // pred_fallthru
    _

// kernel: _forward_impl.7
$region0: #{_forward_impl.7}
  #allocation0 [shape = 'u32[]', space=smem, size = 0x4, offset = 0x4, fixed_abs, tag = 'smem constant byte address 0x4 - core index']
  #allocation1 [shape = 'u32[144,128]{1,0:T(1,128)}', space=vmem, size = 0x12000, scoped, tag = 'internal scratch']
  %s0 = inlined_call_operand.vmem [shape: bf16[2,128], index: 0, kind: input, shape index: {}]
  %s1 = inlined_call_operand.vmem [shape: bf16[128,32], index: 1, kind: input, shape index: {}]
  %s2 = inlined_call_operand.vmem [shape: f32[1,32], index: 2, kind: input, shape index: {}]
  %s3 = inlined_call_operand.vmem [shape: bf16[32,64], index: 3, kind: input, shape index: {}]
  %s4 = inlined_call_operand.vmem [shape: f32[1,64], index: 4, kind: input, shape index: {}]
  %s5 = inlined_call_operand.vmem [shape: f32[2,64], index: 5, kind: output, shape index: {}]
  %s6 = sld [smem:[#allocation0]]
  $region30: #{_forward_impl.7} parent=0
    _
  %s8 = ssub.s32 1, %s6
  %s9 = scalar_select 0, %s8, %s6
  // Predicated region
  $region2: #{_forward_impl.7} parent=0 // pred_check
    _
  $region3: #{_forward_impl.7} parent=0 // pred_check_branch
    %11 = sbr.rel (0) target = $region5
  $region4: #{_forward_impl.7} parent=0 // pred_region
    _
  $region5: #{_forward_impl.7} parent=0 // pred_fallthru
    _
  // Predicated region
  $region6: #{_forward_impl.7} parent=0 // pred_check
    _
  $region7: #{_forward_impl.7} parent=0 // pred_check_branch
    %13 = sbr.rel (0) target = $region9
  $region8: #{_forward_impl.7} parent=0 // pred_region
    _
  $region9: #{_forward_impl.7} parent=0 // pred_fallthru
    _
  // Predicated region
  $region10: #{_forward_impl.7} parent=0 // pred_check
    _
  $region11: #{_forward_impl.7} parent=0 // pred_check_branch
    %15 = sbr.rel (0) target = $region13
  $region12: #{_forward_impl.7} parent=0 // pred_region
    _
  $region13: #{_forward_impl.7} parent=0 // pred_fallthru
    _
  // Predicated region
  $region14: #{_forward_impl.7} parent=0 // pred_check
    _
  $region15: #{_forward_impl.7} parent=0 // pred_check_branch
    %17 = sbr.rel (0) target = $region17
  $region16: #{_forward_impl.7} parent=0 // pred_region
    _
  $region17: #{_forward_impl.7} parent=0 // pred_fallthru
    _
  // Predicated region
  $region18: #{_forward_impl.7} parent=0 // pred_check
    _
  $region19: #{_forward_impl.7} parent=0 // pred_check_branch
    %19 = sbr.rel (0) target = $region21
  $region20: #{_forward_impl.7} parent=0 // pred_region
    _
  $region21: #{_forward_impl.7} parent=0 // pred_fallthru
    _
  %v21 = vld [vmem:[%s0] sm:$0x1]
  %v22 = vld [vmem:[%s1] sm:$0xf]
  %v23 = vld [vmem:[%s1 + $0x4] sm:$0xf]
  %v24 = vld [vmem:[%s1 + $0x8] sm:$0xf]
  %v25 = vld [vmem:[%s1 + $0xc] sm:$0xf]
  %v26 = vld [vmem:[%s1 + $0x10] sm:$0xf]
  %v27 = vld [vmem:[%s1 + $0x14] sm:$0xf]
  %v28 = vld [vmem:[%s1 + $0x18] sm:$0xf]
  %v29 = vld [vmem:[%s1 + $0x1c] sm:$0xf]
  %v30 = vld [vmem:[%s1 + $0x20] sm:$0xf]
  %v31 = vld [vmem:[%s1 + $0x24] sm:$0xf]
  %v32 = vld [vmem:[%s1 + $0x28] sm:$0xf]
  %v33 = vld [vmem:[%s1 + $0x2c] sm:$0xf]
  %v34 = vld [vmem:[%s1 + $0x30] sm:$0xf]
  %v35 = vld [vmem:[%s1 + $0x34] sm:$0xf]
  %v36 = vld [vmem:[%s1 + $0x38] sm:$0xf]
  %v37 = vld [vmem:[%s1 + $0x3c] sm:$0xf]
  %v38 = vld [vmem:[%s2] sm:$0x1]
  %v40 = vlaneseq
  %v41 = vshrl.u32 %v40, 7
  %v42 = vsub.s32 0, %v41
  %v43 = vrot.slane %v38, %v42
  %v61 = vunpack.c.l.b16 %v22
  %v62 = vunpack.c.l.b16 %v23
  %v63 = vunpack.c.l.b16 %v24
  %v64 = vunpack.c.l.b16 %v25
  %v65 = vunpack.c.l.b16 %v26
  %v66 = vunpack.c.l.b16 %v27
  %v67 = vunpack.c.l.b16 %v28
  %v68 = vunpack.c.l.b16 %v29
  %v69 = vunpack.c.l.b16 %v30
  %v70 = vunpack.c.l.b16 %v31
  %v71 = vunpack.c.l.b16 %v32
  %v72 = vunpack.c.l.b16 %v33
  %v73 = vunpack.c.l.b16 %v34
  %v74 = vunpack.c.l.b16 %v35
  %v75 = vunpack.c.l.b16 %v36
  %v76 = vunpack.c.l.b16 %v37
  %v77 = vpack.c.b16 %v62, %v61
  %v78 = vpack.c.b16 %v64, %v63
  %v79 = vpack.c.b16 %v66, %v65
  %v80 = vpack.c.b16 %v68, %v67
  %v81 = vpack.c.b16 %v70, %v69
  %v82 = vpack.c.b16 %v72, %v71
  %v83 = vpack.c.b16 %v74, %v73
  %v84 = vpack.c.b16 %v76, %v75
  %93 = vmatprep.subr.bf16.mxu0 0
  %94 = vmatpush1.bf16.msra.mxu0 %v84
  %95 = vmatprep.subr.bf16.mxu0 0
  %96 = vmatpush1.bf16.msra.mxu0 %v83
  %97 = vmatprep.subr.bf16.mxu0 0
  %98 = vmatpush1.bf16.msra.mxu0 %v82
  %99 = vmatprep.subr.bf16.mxu0 0
  %100 = vmatpush1.bf16.msra.mxu0 %v81
  %101 = vmatprep.subr.bf16.mxu0 0
  %102 = vmatpush1.bf16.msra.mxu0 %v80
  %103 = vmatprep.subr.bf16.mxu0 0
  %104 = vmatpush1.bf16.msra.mxu0 %v79
  %105 = vmatprep.subr.bf16.mxu0 0
  %106 = vmatpush1.bf16.msra.mxu0 %v78
  %107 = vmatprep.subr.bf16.mxu0 0
  %108 = vmatpush1.bf16.msra.mxu0 %v77
  %109 = vmatprep.subr.bf16.mxu0 0
  %110 = vmatpush2.bf16.msra.mxu0 0
  %111 = vmatprep.subr.bf16.mxu0 0
  %112 = vmatpush2.bf16.msra.mxu0 0
  %113 = vmatprep.subr.bf16.mxu0 0
  %114 = vmatpush2.bf16.msra.mxu0 0
  %115 = vmatprep.subr.bf16.mxu0 0
  %116 = vmatpush2.bf16.msra.mxu0 0
  %117 = vmatprep.subr.bf16.mxu0 0
  %118 = vmatpush2.bf16.msra.mxu0 0
  %119 = vmatprep.subr.bf16.mxu0 0
  %120 = vmatpush2.bf16.msra.mxu0 0
  %121 = vmatprep.subr.bf16.mxu0 0
  %122 = vmatpush2.bf16.msra.mxu0 0
  %123 = vmatprep.subr.bf16.mxu0 0
  %124 = vmatpush2.bf16.msra.mxu0 0
  %125 = vmatprep.mubr.bf16.mxu0 0
  %126 = vmatmul.mubr.bf16.gmra.mxu0 %v21
  %v127 = vpop.f32.mrf.mxu0
  %v128 = vadd.f32 %v43, %v127
  %v129 = vpop.f32.mrf.mxu0
  %v130 = vpop.f32.mrf.mxu0
  %v131 = vpop.f32.mrf.mxu0
  %132 = vdwg.mxu0
  %v133 = vmax.f32 %v128, 0.0
  %v134 = vand.u32 2147483647, %v128
  %v135 = vsub.f32 0.0, %v134
  %v136 = vmul.f32 %v135, 1.442695
  %v137 = vpow.pop %v136
  %v138 = vadd.f32 %v137, 1.0
  %v139 = vlog2.pop %v138
  %v140 = vmul.f32 %v139, 0.6931472
  %v141 = vmul.f32 -0.5, %v137
  %v142 = vadd.f32 %v141, 1.0
  %v143 = vmul.f32 %v142, %v137
  %v144 = vand.u32 2147483647, %v137
  %vm145 = vcmp.lt.f32.partialorder %v144, 0.0004427343
  %v146 = vsel %vm145, %v143, %v140
  %v147 = vadd.f32 %v133, %v146
  %v148 = vtanh.pop %v147
  %v149 = vmul.f32 %v128, %v148
  %v150 = vpack.c.bf16 %v149, %v149
  %v151 = vld [vmem:[%s3] sm:$0xf]
  %v152 = vld [vmem:[%s3 + $0x4] sm:$0xf]
  %v153 = vld [vmem:[%s3 + $0x8] sm:$0xf]
  %v154 = vld [vmem:[%s3 + $0xc] sm:$0xf]
  %v155 = vld [vmem:[%s4] sm:$0x1]
  %v157 = vlaneseq
  %v158 = vshrl.u32 %v157, 7
  %v159 = vsub.s32 0, %v158
  %v160 = vrot.slane %v155, %v159
  %v166 = vunpack.c.l.b16 %v151
  %v167 = vunpack.c.l.b16 %v152
  %v168 = vunpack.c.l.b16 %v153
  %v169 = vunpack.c.l.b16 %v154
  %v170 = vpack.c.b16 %v167, %v166
  %v171 = vpack.c.b16 %v169, %v168
  %vm174 = vcmask 261120
  %v176 = vsel %vm174, %v150, 0
  %178 = vmatprep.subr.bf16.mxu0 0
  %179 = vmatpush1.bf16.msra.mxu0 0
  %180 = vmatprep.subr.bf16.mxu0 0
  %181 = vmatpush1.bf16.msra.mxu0 0
  %182 = vmatprep.subr.bf16.mxu0 0
  %183 = vmatpush1.bf16.msra.mxu0 0
  %184 = vmatprep.subr.bf16.mxu0 0
  %185 = vmatpush1.bf16.msra.mxu0 0
  %186 = vmatprep.subr.bf16.mxu0 0
  %187 = vmatpush1.bf16.msra.mxu0 0
  %188 = vmatprep.subr.bf16.mxu0 0
  %189 = vmatpush1.bf16.msra.mxu0 0
  %190 = vmatprep.subr.bf16.mxu0 0
  %191 = vmatpush1.bf16.msra.mxu0 %v171
  %192 = vmatprep.subr.bf16.mxu0 0
  %193 = vmatpush1.bf16.msra.mxu0 %v170
  %194 = vmatprep.subr.bf16.mxu0 0
  %195 = vmatpush2.bf16.msra.mxu0 0
  %196 = vmatprep.subr.bf16.mxu0 0
  %197 = vmatpush2.bf16.msra.mxu0 0
  %198 = vmatprep.subr.bf16.mxu0 0
  %199 = vmatpush2.bf16.msra.mxu0 0
  %200 = vmatprep.subr.bf16.mxu0 0
  %201 = vmatpush2.bf16.msra.mxu0 0
  %202 = vmatprep.subr.bf16.mxu0 0
  %203 = vmatpush2.bf16.msra.mxu0 0
  %204 = vmatprep.subr.bf16.mxu0 0
  %205 = vmatpush2.bf16.msra.mxu0 0
  %206 = vmatprep.subr.bf16.mxu0 0
  %207 = vmatpush2.bf16.msra.mxu0 0
  %208 = vmatprep.subr.bf16.mxu0 0
  %209 = vmatpush2.bf16.msra.mxu0 0
  %210 = vmatprep.mubr.bf16.mxu0 0
  %211 = vmatmul.mubr.bf16.gmra.mxu0 %v176
  %v212 = vpop.f32.mrf.mxu0
  %v213 = vadd.f32 %v160, %v212
  %v214 = vpop.f32.mrf.mxu0
  %v215 = vpop.f32.mrf.mxu0
  %v216 = vpop.f32.mrf.mxu0
  %217 = vdwg.mxu0
  %vm218 = vcmask 517120
  %219 = vst.msk [vmem:[%s5] sm:$0x3] %vm218, %v213
  // Predicated region
  $region22: #{_forward_impl.7} parent=0 // pred_check
    _
  $region23: #{_forward_impl.7} parent=0 // pred_check_branch
    %221 = sbr.rel (0) target = $region25
  $region24: #{_forward_impl.7} parent=0 // pred_region
    _
  $region25: #{_forward_impl.7} parent=0 // pred_fallthru
    _
  // Predicated region
  $region26: #{_forward_impl.7} parent=0 // pred_check
    _
  $region27: #{_forward_impl.7} parent=0 // pred_check_branch
    %223 = sbr.rel (0) target = $region29
  $region28: #{_forward_impl.7} parent=0 // pred_region
    _
  $region29: #{_forward_impl.7} parent=0 // pred_fallthru
    _

</llo_original>
